<compile_context>
chip_gen: v6e
topology: v6e:2x2x1
jax: 0.10.0
libtpu: 0.0.40
codegen_flags: <defaults>
</compile_context>

<pallas_src>
import jax
import jax.numpy as jnp
from jax import lax
from jax.experimental import pallas as pl
from jax.experimental.pallas import tpu as pltpu

HIDDEN_SIZE = 32
INPUT_SIZE = 1
OUTPUT_SIZE = 1


def _make_lstm_kernel(T, Bp, H):
    """Build the kernel closure for static (T, Bp, H)."""
    G = 4 * H

    def kernel(xaug_ref, wpack_ref, out_ref):
        """LSTM recurrence + output Linear, fully VMEM-resident.

        xaug_ref : (T*Bp, 8)   rows = [x_{t,b}, 1, 0,0,0,0,0,0], row idx = t*Bp+b
        wpack_ref: (8+H, 4H)   packed params (see wrapper for row layout)
        out_ref  : (T, Bp)     per-timestep predictions
        """
        # wpack row layout:
        #   0        : W_ih row (I=1), g-gate cols pre-scaled by 2
        #   1        : b_ih + b_hh,    g-gate cols pre-scaled by 2
        #   2        : W_lin row (lanes 0:H)
        #   3        : b_lin (lane 0)
        #   4..7     : zeros (rows 0..7 form one K=8 MXU operand)
        #   8..8+H-1 : W_hh^T (H, 4H), g-gate cols pre-scaled by 2
        aug_w = wpack_ref[0:8, :]                 # (8, 4H)
        whh = wpack_ref[8:8 + H, :]               # (H, 4H)
        wlin = wpack_ref[2:3, 0:H]                # (1, H)
        blin = wpack_ref[3:4, 0:1]                # (1, 1)

        # ---- Hoisted input projection + bias for ALL timesteps: ONE MXU pass.
        # Columns 2..7 of x_aug are zero, so the W_lin / b_lin rows sharing the
        # pack contribute nothing here.
        x_aug = xaug_ref[...]                                         # (T*Bp, 8)
        x_proj = jnp.dot(x_aug, aug_w,
                         preferred_element_type=jnp.float32)          # (T*Bp, 4H)

        # ---- Serial recurrence, fully unrolled (T static & small).
        h = jnp.zeros((Bp, H), jnp.float32)
        c = jnp.zeros((Bp, H), jnp.float32)
        hs = []
        for t in range(T):
            gates = x_proj[t * Bp:(t + 1) * Bp, :] + jnp.dot(
                h, whh, preferred_element_type=jnp.float32)           # (Bp, 4H)
            # Single EUP pass: g-gate pre-activations are already 2*z_g, so
            # tanh(z_g) = 2*sigmoid(2*z_g) - 1 falls out of the same sigmoid.
            sig = jax.nn.sigmoid(gates)
            i_g = sig[:, 0:H]
            f_g = sig[:, H:2 * H]
            g_g = 2.0 * sig[:, 2 * H:3 * H] - 1.0
            o_g = sig[:, 3 * H:4 * H]

            c = f_g * c + i_g * g_g
            h = o_g * jnp.tanh(c)
            hs.append(h)

        # ---- Output Linear (O = 1) applied once, after the loop, on SSA h's.
        h_all = jnp.stack(hs, axis=0)                                 # (T, Bp, H)
        pred = jnp.sum(h_all * wlin[None, :, :], axis=-1) + blin      # (T, Bp)
        out_ref[...] = pred

    return kernel


def init_params(key, input_size=INPUT_SIZE, hidden_size=HIDDEN_SIZE,
                output_size=OUTPUT_SIZE):
    """Deterministic init mirroring torch.nn.LSTM / nn.Linear U(-1/sqrt(H), 1/sqrt(H))."""
    k_lstm = 1.0 / (hidden_size ** 0.5)
    k_lin = 1.0 / (hidden_size ** 0.5)
    ks = jax.random.split(key, 6)
    return {
        "w_ih": jax.random.uniform(ks[0], (4 * hidden_size, input_size),
                                   jnp.float32, -k_lstm, k_lstm),
        "w_hh": jax.random.uniform(ks[1], (4 * hidden_size, hidden_size),
                                   jnp.float32, -k_lstm, k_lstm),
        "b_ih": jax.random.uniform(ks[2], (4 * hidden_size,),
                                   jnp.float32, -k_lstm, k_lstm),
        "b_hh": jax.random.uniform(ks[3], (4 * hidden_size,),
                                   jnp.float32, -k_lstm, k_lstm),
        "w_lin": jax.random.uniform(ks[4], (output_size, hidden_size),
                                    jnp.float32, -k_lin, k_lin),
        "b_lin": jax.random.uniform(ks[5], (output_size,),
                                    jnp.float32, -k_lin, k_lin),
    }


def lstm_predictor(x, params):
    """x: (B, T, I=1) float32  ->  predictions: (B, T, O=1) float32."""
    B, T, I = x.shape
    assert I == 1, "kernel specialized for input_size == 1"
    H = params["w_hh"].shape[1]
    G = 4 * H
    O = params["w_lin"].shape[0]
    assert O == 1, "kernel specialized for output_size == 1"

    # ---- Input: pad batch to 8 sublanes, go time-major, flatten (t*Bp + b)
    # rows, and augment with a ones column (bias) + zero padding to K=8.
    Bp = ((B + 7) // 8) * 8
    x2d = x[..., 0].astype(jnp.float32)                       # (B, T)
    x2d = jnp.pad(x2d, ((0, Bp - B), (0, 0)))                 # (Bp, T)
    x_flat = x2d.T.reshape(T * Bp, 1)                         # (T*Bp, 1)
    x_aug = jnp.concatenate(
        [x_flat, jnp.ones_like(x_flat),
         jnp.zeros((T * Bp, 6), jnp.float32)], axis=1)        # (T*Bp, 8)

    # ---- Pack all parameters into one (8+H, 4H) array; pre-scale the g-gate
    # (cell gate) pre-activations by 2 for the single-sigmoid trick.
    scale = jnp.ones((G,), jnp.float32).at[2 * H:3 * H].set(2.0)
    wih_row = (params["w_ih"].astype(jnp.float32)[:, 0] * scale)       # (4H,)
    b_row = ((params["b_ih"] + params["b_hh"]).astype(jnp.float32) * scale)
    whh_t = (params["w_hh"].astype(jnp.float32) * scale[:, None]).T    # (H, 4H)

    wpack = jnp.zeros((8 + H, G), jnp.float32)
    wpack = wpack.at[0, :].set(wih_row)
    wpack = wpack.at[1, :].set(b_row)
    wpack = wpack.at[2, :H].set(params["w_lin"].astype(jnp.float32)[0])
    wpack = wpack.at[3, 0].set(params["b_lin"].astype(jnp.float32)[0])
    wpack = wpack.at[8:8 + H, :].set(whh_t)

    vmem = pl.BlockSpec(memory_space=pltpu.MemorySpace.VMEM)
    out_tm = pl.pallas_call(
        _make_lstm_kernel(T, Bp, H),
        out_shape=jax.ShapeDtypeStruct((T, Bp), jnp.float32),
        in_specs=[vmem, vmem],
        out_specs=vmem,
    )(x_aug, wpack)

    # (T, Bp) -> (B, T, 1)
    return out_tm.T[:B][..., None]


def lstm_predictor_ref(x, params):
    """Pure-JAX reference of the PyTorch forward pass (for validation)."""
    B, T, I = x.shape
    H = params["w_hh"].shape[1]
    wih_t = params["w_ih"].T
    whh_t = params["w_hh"].T
    b = params["b_ih"] + params["b_hh"]
    wlin_t = params["w_lin"].T
    blin = params["b_lin"]

    def step(carry, x_t):
        h, c = carry
        gates = x_t @ wih_t + h @ whh_t + b
        i_g = jax.nn.sigmoid(gates[:, 0:H])
        f_g = jax.nn.sigmoid(gates[:, H:2 * H])
        g_g = jnp.tanh(gates[:, 2 * H:3 * H])
        o_g = jax.nn.sigmoid(gates[:, 3 * H:4 * H])
        c_new = f_g * c + i_g * g_g
        h_new = o_g * jnp.tanh(c_new)
        return (h_new, c_new), h_new @ wlin_t + blin

    x_tm = jnp.transpose(x, (1, 0, 2))
    init = (jnp.zeros((B, H), jnp.float32), jnp.zeros((B, H), jnp.float32))
    _, preds = lax.scan(step, init, x_tm)
    return jnp.transpose(preds, (1, 0, 2))


if __name__ == "__main__":
    key = jax.random.PRNGKey(0)
    pkey, xkey = jax.random.split(key)

    params = init_params(pkey)

    batch, seq = 2, 8
    x = jax.random.normal(xkey, (batch, seq, INPUT_SIZE), dtype=jnp.float32)

    out = lstm_predictor(x, params)
    out = jax.block_until_ready(out)

    ref = jax.block_until_ready(lstm_predictor_ref(x, params))

    assert out.shape == (batch, seq, OUTPUT_SIZE), out.shape
    assert jnp.all(jnp.isfinite(out)), "non-finite output"
    assert jnp.allclose(out, ref, rtol=1e-3, atol=1e-3), (
        f"mismatch vs reference, max abs err = {jnp.max(jnp.abs(out - ref))}")

    print("KERNEL_OK")
</pallas_src>

<mosaic_0001>
module attributes {stable_mosaic.version = 11 : i64} {
  func.func @kernel(%arg0: memref<64x8xf32, #tpu.memory_space<vmem>>, %arg1: memref<40x128xf32, #tpu.memory_space<vmem>>, %arg2: memref<8x8xf32, #tpu.memory_space<vmem>>) attributes {dimension_semantics = [], scalar_prefetch = 0 : i64, scratch_operands = 0 : i64, tpu.core_type = #tpu.core_type<tc>} {
    %c0 = arith.constant 0 : index
    %c0_0 = arith.constant 0 : index
    %0 = vector.load %arg1[%c0, %c0_0] : memref<40x128xf32, #tpu.memory_space<vmem>>, vector<8x128xf32>
    %c8 = arith.constant 8 : index
    %c0_1 = arith.constant 0 : index
    %1 = vector.load %arg1[%c8, %c0_1] : memref<40x128xf32, #tpu.memory_space<vmem>>, vector<32x128xf32>
    %c2 = arith.constant 2 : index
    %c0_2 = arith.constant 0 : index
    %2 = vector.load %arg1[%c2, %c0_2] : memref<40x128xf32, #tpu.memory_space<vmem>>, vector<1x32xf32>
    %c3 = arith.constant 3 : index
    %c0_3 = arith.constant 0 : index
    %3 = vector.load %arg1[%c3, %c0_3] : memref<40x128xf32, #tpu.memory_space<vmem>>, vector<1x1xf32>
    %c0_4 = arith.constant 0 : index
    %c0_5 = arith.constant 0 : index
    %4 = vector.load %arg0[%c0_4, %c0_5] : memref<64x8xf32, #tpu.memory_space<vmem>>, vector<64x8xf32>
    %cst = arith.constant dense<0.000000e+00> : vector<64x128xf32>
    %5 = tpu.matmul %4, %0, %cst {dimension_numbers = #tpu.dot_dimension_numbers<[1], [0], [0], [1], [0, 0, 1, 1], [], []>} : vector<64x8xf32>, vector<8x128xf32>, vector<64x128xf32> -> vector<64x128xf32>
    %cst_6 = arith.constant 0.000000e+00 : f32
    %6 = vector.broadcast %cst_6 : f32 to vector<8x32xf32>
    %cst_7 = arith.constant 0.000000e+00 : f32
    %7 = vector.broadcast %cst_7 : f32 to vector<8x32xf32>
    %8 = vector.extract_strided_slice %5 {offsets = [0, 0], sizes = [8, 128], strides = [1, 1]} : vector<64x128xf32> to vector<8x128xf32>
    %cst_8 = arith.constant dense<0.000000e+00> : vector<8x128xf32>
    %9 = tpu.matmul %6, %1, %cst_8 {dimension_numbers = #tpu.dot_dimension_numbers<[1], [0], [0], [1], [0, 0, 1, 1], [], []>} : vector<8x32xf32>, vector<32x128xf32>, vector<8x128xf32> -> vector<8x128xf32>
    %10 = arith.addf %8, %9 : vector<8x128xf32>
    %11 = arith.negf %10 : vector<8x128xf32>
    %12 = math.exp %11 : vector<8x128xf32>
    %cst_9 = arith.constant 1.000000e+00 : f32
    %13 = vector.broadcast %cst_9 : f32 to vector<8x128xf32>
    %14 = arith.addf %13, %12 : vector<8x128xf32>
    %15 = arith.divf %13, %14 : vector<8x128xf32>
    %16 = vector.extract_strided_slice %15 {offsets = [0, 0], sizes = [8, 32], strides = [1, 1]} : vector<8x128xf32> to vector<8x32xf32>
    %17 = vector.extract_strided_slice %15 {offsets = [0, 32], sizes = [8, 32], strides = [1, 1]} : vector<8x128xf32> to vector<8x32xf32>
    %18 = vector.extract_strided_slice %15 {offsets = [0, 64], sizes = [8, 32], strides = [1, 1]} : vector<8x128xf32> to vector<8x32xf32>
    %cst_10 = arith.constant 2.000000e+00 : f32
    %19 = vector.broadcast %cst_10 : f32 to vector<8x32xf32>
    %20 = arith.mulf %19, %18 : vector<8x32xf32>
    %cst_11 = arith.constant 1.000000e+00 : f32
    %21 = vector.broadcast %cst_11 : f32 to vector<8x32xf32>
    %22 = arith.subf %20, %21 : vector<8x32xf32>
    %23 = vector.extract_strided_slice %15 {offsets = [0, 96], sizes = [8, 32], strides = [1, 1]} : vector<8x128xf32> to vector<8x32xf32>
    %24 = arith.mulf %17, %7 : vector<8x32xf32>
    %25 = arith.mulf %16, %22 : vector<8x32xf32>
    %26 = arith.addf %24, %25 : vector<8x32xf32>
    %27 = math.tanh %26 : vector<8x32xf32>
    %28 = arith.mulf %23, %27 : vector<8x32xf32>
    %29 = vector.extract_strided_slice %5 {offsets = [8, 0], sizes = [8, 128], strides = [1, 1]} : vector<64x128xf32> to vector<8x128xf32>
    %cst_12 = arith.constant dense<0.000000e+00> : vector<8x128xf32>
    %30 = tpu.matmul %28, %1, %cst_12 {dimension_numbers = #tpu.dot_dimension_numbers<[1], [0], [0], [1], [0, 0, 1, 1], [], []>} : vector<8x32xf32>, vector<32x128xf32>, vector<8x128xf32> -> vector<8x128xf32>
    %31 = arith.addf %29, %30 : vector<8x128xf32>
    %32 = arith.negf %31 : vector<8x128xf32>
    %33 = math.exp %32 : vector<8x128xf32>
    %cst_13 = arith.constant 1.000000e+00 : f32
    %34 = vector.broadcast %cst_13 : f32 to vector<8x128xf32>
    %35 = arith.addf %34, %33 : vector<8x128xf32>
    %36 = arith.divf %34, %35 : vector<8x128xf32>
    %37 = vector.extract_strided_slice %36 {offsets = [0, 0], sizes = [8, 32], strides = [1, 1]} : vector<8x128xf32> to vector<8x32xf32>
    %38 = vector.extract_strided_slice %36 {offsets = [0, 32], sizes = [8, 32], strides = [1, 1]} : vector<8x128xf32> to vector<8x32xf32>
    %39 = vector.extract_strided_slice %36 {offsets = [0, 64], sizes = [8, 32], strides = [1, 1]} : vector<8x128xf32> to vector<8x32xf32>
    %cst_14 = arith.constant 2.000000e+00 : f32
    %40 = vector.broadcast %cst_14 : f32 to vector<8x32xf32>
    %41 = arith.mulf %40, %39 : vector<8x32xf32>
    %cst_15 = arith.constant 1.000000e+00 : f32
    %42 = vector.broadcast %cst_15 : f32 to vector<8x32xf32>
    %43 = arith.subf %41, %42 : vector<8x32xf32>
    %44 = vector.extract_strided_slice %36 {offsets = [0, 96], sizes = [8, 32], strides = [1, 1]} : vector<8x128xf32> to vector<8x32xf32>
    %45 = arith.mulf %38, %26 : vector<8x32xf32>
    %46 = arith.mulf %37, %43 : vector<8x32xf32>
    %47 = arith.addf %45, %46 : vector<8x32xf32>
    %48 = math.tanh %47 : vector<8x32xf32>
    %49 = arith.mulf %44, %48 : vector<8x32xf32>
    %50 = vector.extract_strided_slice %5 {offsets = [16, 0], sizes = [8, 128], strides = [1, 1]} : vector<64x128xf32> to vector<8x128xf32>
    %cst_16 = arith.constant dense<0.000000e+00> : vector<8x128xf32>
    %51 = tpu.matmul %49, %1, %cst_16 {dimension_numbers = #tpu.dot_dimension_numbers<[1], [0], [0], [1], [0, 0, 1, 1], [], []>} : vector<8x32xf32>, vector<32x128xf32>, vector<8x128xf32> -> vector<8x128xf32>
    %52 = arith.addf %50, %51 : vector<8x128xf32>
    %53 = arith.negf %52 : vector<8x128xf32>
    %54 = math.exp %53 : vector<8x128xf32>
    %cst_17 = arith.constant 1.000000e+00 : f32
    %55 = vector.broadcast %cst_17 : f32 to vector<8x128xf32>
    %56 = arith.addf %55, %54 : vector<8x128xf32>
    %57 = arith.divf %55, %56 : vector<8x128xf32>
    %58 = vector.extract_strided_slice %57 {offsets = [0, 0], sizes = [8, 32], strides = [1, 1]} : vector<8x128xf32> to vector<8x32xf32>
    %59 = vector.extract_strided_slice %57 {offsets = [0, 32], sizes = [8, 32], strides = [1, 1]} : vector<8x128xf32> to vector<8x32xf32>
    %60 = vector.extract_strided_slice %57 {offsets = [0, 64], sizes = [8, 32], strides = [1, 1]} : vector<8x128xf32> to vector<8x32xf32>
    %cst_18 = arith.constant 2.000000e+00 : f32
    %61 = vector.broadcast %cst_18 : f32 to vector<8x32xf32>
    %62 = arith.mulf %61, %60 : vector<8x32xf32>
    %cst_19 = arith.constant 1.000000e+00 : f32
    %63 = vector.broadcast %cst_19 : f32 to vector<8x32xf32>
    %64 = arith.subf %62, %63 : vector<8x32xf32>
    %65 = vector.extract_strided_slice %57 {offsets = [0, 96], sizes = [8, 32], strides = [1, 1]} : vector<8x128xf32> to vector<8x32xf32>
    %66 = arith.mulf %59, %47 : vector<8x32xf32>
    %67 = arith.mulf %58, %64 : vector<8x32xf32>
    %68 = arith.addf %66, %67 : vector<8x32xf32>
    %69 = math.tanh %68 : vector<8x32xf32>
    %70 = arith.mulf %65, %69 : vector<8x32xf32>
    %71 = vector.extract_strided_slice %5 {offsets = [24, 0], sizes = [8, 128], strides = [1, 1]} : vector<64x128xf32> to vector<8x128xf32>
    %cst_20 = arith.constant dense<0.000000e+00> : vector<8x128xf32>
    %72 = tpu.matmul %70, %1, %cst_20 {dimension_numbers = #tpu.dot_dimension_numbers<[1], [0], [0], [1], [0, 0, 1, 1], [], []>} : vector<8x32xf32>, vector<32x128xf32>, vector<8x128xf32> -> vector<8x128xf32>
    %73 = arith.addf %71, %72 : vector<8x128xf32>
    %74 = arith.negf %73 : vector<8x128xf32>
    %75 = math.exp %74 : vector<8x128xf32>
    %cst_21 = arith.constant 1.000000e+00 : f32
    %76 = vector.broadcast %cst_21 : f32 to vector<8x128xf32>
    %77 = arith.addf %76, %75 : vector<8x128xf32>
    %78 = arith.divf %76, %77 : vector<8x128xf32>
    %79 = vector.extract_strided_slice %78 {offsets = [0, 0], sizes = [8, 32], strides = [1, 1]} : vector<8x128xf32> to vector<8x32xf32>
    %80 = vector.extract_strided_slice %78 {offsets = [0, 32], sizes = [8, 32], strides = [1, 1]} : vector<8x128xf32> to vector<8x32xf32>
    %81 = vector.extract_strided_slice %78 {offsets = [0, 64], sizes = [8, 32], strides = [1, 1]} : vector<8x128xf32> to vector<8x32xf32>
    %cst_22 = arith.constant 2.000000e+00 : f32
    %82 = vector.broadcast %cst_22 : f32 to vector<8x32xf32>
    %83 = arith.mulf %82, %81 : vector<8x32xf32>
    %cst_23 = arith.constant 1.000000e+00 : f32
    %84 = vector.broadcast %cst_23 : f32 to vector<8x32xf32>
    %85 = arith.subf %83, %84 : vector<8x32xf32>
    %86 = vector.extract_strided_slice %78 {offsets = [0, 96], sizes = [8, 32], strides = [1, 1]} : vector<8x128xf32> to vector<8x32xf32>
    %87 = arith.mulf %80, %68 : vector<8x32xf32>
    %88 = arith.mulf %79, %85 : vector<8x32xf32>
    %89 = arith.addf %87, %88 : vector<8x32xf32>
    %90 = math.tanh %89 : vector<8x32xf32>
    %91 = arith.mulf %86, %90 : vector<8x32xf32>
    %92 = vector.extract_strided_slice %5 {offsets = [32, 0], sizes = [8, 128], strides = [1, 1]} : vector<64x128xf32> to vector<8x128xf32>
    %cst_24 = arith.constant dense<0.000000e+00> : vector<8x128xf32>
    %93 = tpu.matmul %91, %1, %cst_24 {dimension_numbers = #tpu.dot_dimension_numbers<[1], [0], [0], [1], [0, 0, 1, 1], [], []>} : vector<8x32xf32>, vector<32x128xf32>, vector<8x128xf32> -> vector<8x128xf32>
    %94 = arith.addf %92, %93 : vector<8x128xf32>
    %95 = arith.negf %94 : vector<8x128xf32>
    %96 = math.exp %95 : vector<8x128xf32>
    %cst_25 = arith.constant 1.000000e+00 : f32
    %97 = vector.broadcast %cst_25 : f32 to vector<8x128xf32>
    %98 = arith.addf %97, %96 : vector<8x128xf32>
    %99 = arith.divf %97, %98 : vector<8x128xf32>
    %100 = vector.extract_strided_slice %99 {offsets = [0, 0], sizes = [8, 32], strides = [1, 1]} : vector<8x128xf32> to vector<8x32xf32>
    %101 = vector.extract_strided_slice %99 {offsets = [0, 32], sizes = [8, 32], strides = [1, 1]} : vector<8x128xf32> to vector<8x32xf32>
    %102 = vector.extract_strided_slice %99 {offsets = [0, 64], sizes = [8, 32], strides = [1, 1]} : vector<8x128xf32> to vector<8x32xf32>
    %cst_26 = arith.constant 2.000000e+00 : f32
    %103 = vector.broadcast %cst_26 : f32 to vector<8x32xf32>
    %104 = arith.mulf %103, %102 : vector<8x32xf32>
    %cst_27 = arith.constant 1.000000e+00 : f32
    %105 = vector.broadcast %cst_27 : f32 to vector<8x32xf32>
    %106 = arith.subf %104, %105 : vector<8x32xf32>
    %107 = vector.extract_strided_slice %99 {offsets = [0, 96], sizes = [8, 32], strides = [1, 1]} : vector<8x128xf32> to vector<8x32xf32>
    %108 = arith.mulf %101, %89 : vector<8x32xf32>
    %109 = arith.mulf %100, %106 : vector<8x32xf32>
    %110 = arith.addf %108, %109 : vector<8x32xf32>
    %111 = math.tanh %110 : vector<8x32xf32>
    %112 = arith.mulf %107, %111 : vector<8x32xf32>
    %113 = vector.extract_strided_slice %5 {offsets = [40, 0], sizes = [8, 128], strides = [1, 1]} : vector<64x128xf32> to vector<8x128xf32>
    %cst_28 = arith.constant dense<0.000000e+00> : vector<8x128xf32>
    %114 = tpu.matmul %112, %1, %cst_28 {dimension_numbers = #tpu.dot_dimension_numbers<[1], [0], [0], [1], [0, 0, 1, 1], [], []>} : vector<8x32xf32>, vector<32x128xf32>, vector<8x128xf32> -> vector<8x128xf32>
    %115 = arith.addf %113, %114 : vector<8x128xf32>
    %116 = arith.negf %115 : vector<8x128xf32>
    %117 = math.exp %116 : vector<8x128xf32>
    %cst_29 = arith.constant 1.000000e+00 : f32
    %118 = vector.broadcast %cst_29 : f32 to vector<8x128xf32>
    %119 = arith.addf %118, %117 : vector<8x128xf32>
    %120 = arith.divf %118, %119 : vector<8x128xf32>
    %121 = vector.extract_strided_slice %120 {offsets = [0, 0], sizes = [8, 32], strides = [1, 1]} : vector<8x128xf32> to vector<8x32xf32>
    %122 = vector.extract_strided_slice %120 {offsets = [0, 32], sizes = [8, 32], strides = [1, 1]} : vector<8x128xf32> to vector<8x32xf32>
    %123 = vector.extract_strided_slice %120 {offsets = [0, 64], sizes = [8, 32], strides = [1, 1]} : vector<8x128xf32> to vector<8x32xf32>
    %cst_30 = arith.constant 2.000000e+00 : f32
    %124 = vector.broadcast %cst_30 : f32 to vector<8x32xf32>
    %125 = arith.mulf %124, %123 : vector<8x32xf32>
    %cst_31 = arith.constant 1.000000e+00 : f32
    %126 = vector.broadcast %cst_31 : f32 to vector<8x32xf32>
    %127 = arith.subf %125, %126 : vector<8x32xf32>
    %128 = vector.extract_strided_slice %120 {offsets = [0, 96], sizes = [8, 32], strides = [1, 1]} : vector<8x128xf32> to vector<8x32xf32>
    %129 = arith.mulf %122, %110 : vector<8x32xf32>
    %130 = arith.mulf %121, %127 : vector<8x32xf32>
    %131 = arith.addf %129, %130 : vector<8x32xf32>
    %132 = math.tanh %131 : vector<8x32xf32>
    %133 = arith.mulf %128, %132 : vector<8x32xf32>
    %134 = vector.extract_strided_slice %5 {offsets = [48, 0], sizes = [8, 128], strides = [1, 1]} : vector<64x128xf32> to vector<8x128xf32>
    %cst_32 = arith.constant dense<0.000000e+00> : vector<8x128xf32>
    %135 = tpu.matmul %133, %1, %cst_32 {dimension_numbers = #tpu.dot_dimension_numbers<[1], [0], [0], [1], [0, 0, 1, 1], [], []>} : vector<8x32xf32>, vector<32x128xf32>, vector<8x128xf32> -> vector<8x128xf32>
    %136 = arith.addf %134, %135 : vector<8x128xf32>
    %137 = arith.negf %136 : vector<8x128xf32>
    %138 = math.exp %137 : vector<8x128xf32>
    %cst_33 = arith.constant 1.000000e+00 : f32
    %139 = vector.broadcast %cst_33 : f32 to vector<8x128xf32>
    %140 = arith.addf %139, %138 : vector<8x128xf32>
    %141 = arith.divf %139, %140 : vector<8x128xf32>
    %142 = vector.extract_strided_slice %141 {offsets = [0, 0], sizes = [8, 32], strides = [1, 1]} : vector<8x128xf32> to vector<8x32xf32>
    %143 = vector.extract_strided_slice %141 {offsets = [0, 32], sizes = [8, 32], strides = [1, 1]} : vector<8x128xf32> to vector<8x32xf32>
    %144 = vector.extract_strided_slice %141 {offsets = [0, 64], sizes = [8, 32], strides = [1, 1]} : vector<8x128xf32> to vector<8x32xf32>
    %cst_34 = arith.constant 2.000000e+00 : f32
    %145 = vector.broadcast %cst_34 : f32 to vector<8x32xf32>
    %146 = arith.mulf %145, %144 : vector<8x32xf32>
    %cst_35 = arith.constant 1.000000e+00 : f32
    %147 = vector.broadcast %cst_35 : f32 to vector<8x32xf32>
    %148 = arith.subf %146, %147 : vector<8x32xf32>
    %149 = vector.extract_strided_slice %141 {offsets = [0, 96], sizes = [8, 32], strides = [1, 1]} : vector<8x128xf32> to vector<8x32xf32>
    %150 = arith.mulf %143, %131 : vector<8x32xf32>
    %151 = arith.mulf %142, %148 : vector<8x32xf32>
    %152 = arith.addf %150, %151 : vector<8x32xf32>
    %153 = math.tanh %152 : vector<8x32xf32>
    %154 = arith.mulf %149, %153 : vector<8x32xf32>
    %155 = vector.extract_strided_slice %5 {offsets = [56, 0], sizes = [8, 128], strides = [1, 1]} : vector<64x128xf32> to vector<8x128xf32>
    %cst_36 = arith.constant dense<0.000000e+00> : vector<8x128xf32>
    %156 = tpu.matmul %154, %1, %cst_36 {dimension_numbers = #tpu.dot_dimension_numbers<[1], [0], [0], [1], [0, 0, 1, 1], [], []>} : vector<8x32xf32>, vector<32x128xf32>, vector<8x128xf32> -> vector<8x128xf32>
    %157 = arith.addf %155, %156 : vector<8x128xf32>
    %158 = arith.negf %157 : vector<8x128xf32>
    %159 = math.exp %158 : vector<8x128xf32>
    %cst_37 = arith.constant 1.000000e+00 : f32
    %160 = vector.broadcast %cst_37 : f32 to vector<8x128xf32>
    %161 = arith.addf %160, %159 : vector<8x128xf32>
    %162 = arith.divf %160, %161 : vector<8x128xf32>
    %163 = vector.extract_strided_slice %162 {offsets = [0, 0], sizes = [8, 32], strides = [1, 1]} : vector<8x128xf32> to vector<8x32xf32>
    %164 = vector.extract_strided_slice %162 {offsets = [0, 32], sizes = [8, 32], strides = [1, 1]} : vector<8x128xf32> to vector<8x32xf32>
    %165 = vector.extract_strided_slice %162 {offsets = [0, 64], sizes = [8, 32], strides = [1, 1]} : vector<8x128xf32> to vector<8x32xf32>
    %cst_38 = arith.constant 2.000000e+00 : f32
    %166 = vector.broadcast %cst_38 : f32 to vector<8x32xf32>
    %167 = arith.mulf %166, %165 : vector<8x32xf32>
    %cst_39 = arith.constant 1.000000e+00 : f32
    %168 = vector.broadcast %cst_39 : f32 to vector<8x32xf32>
    %169 = arith.subf %167, %168 : vector<8x32xf32>
    %170 = vector.extract_strided_slice %162 {offsets = [0, 96], sizes = [8, 32], strides = [1, 1]} : vector<8x128xf32> to vector<8x32xf32>
    %171 = arith.mulf %164, %152 : vector<8x32xf32>
    %172 = arith.mulf %163, %169 : vector<8x32xf32>
    %173 = arith.addf %171, %172 : vector<8x32xf32>
    %174 = math.tanh %173 : vector<8x32xf32>
    %175 = arith.mulf %170, %174 : vector<8x32xf32>
    %176 = vector.shape_cast %28 : vector<8x32xf32> to vector<1x8x32xf32>
    %177 = vector.shape_cast %49 : vector<8x32xf32> to vector<1x8x32xf32>
    %178 = vector.shape_cast %70 : vector<8x32xf32> to vector<1x8x32xf32>
    %179 = vector.shape_cast %91 : vector<8x32xf32> to vector<1x8x32xf32>
    %180 = vector.shape_cast %112 : vector<8x32xf32> to vector<1x8x32xf32>
    %181 = vector.shape_cast %133 : vector<8x32xf32> to vector<1x8x32xf32>
    %182 = vector.shape_cast %154 : vector<8x32xf32> to vector<1x8x32xf32>
    %183 = vector.shape_cast %175 : vector<8x32xf32> to vector<1x8x32xf32>
    %184 = tpu.concatenate %176, %177, %178, %179, %180, %181, %182, %183 in 0 : vector<1x8x32xf32>, vector<1x8x32xf32>, vector<1x8x32xf32>, vector<1x8x32xf32>, vector<1x8x32xf32>, vector<1x8x32xf32>, vector<1x8x32xf32>, vector<1x8x32xf32> -> vector<8x8x32xf32>
    %185 = vector.shape_cast %2 : vector<1x32xf32> to vector<1x1x32xf32>
    %186 = vector.broadcast %185 : vector<1x1x32xf32> to vector<8x8x32xf32>
    %187 = arith.mulf %184, %186 : vector<8x8x32xf32>
    %cst_40 = arith.constant dense<0.000000e+00> : vector<8x8xf32>
    %188 = vector.multi_reduction <add>, %187, %cst_40 [2] : vector<8x8x32xf32> to vector<8x8xf32>
    %189 = vector.broadcast %3 : vector<1x1xf32> to vector<8x8xf32>
    %190 = arith.addf %188, %189 : vector<8x8xf32>
    %c0_41 = arith.constant 0 : index
    %c0_42 = arith.constant 0 : index
    %191 = vector.load %arg2[%c0_41, %c0_42] : memref<8x8xf32, #tpu.memory_space<vmem>>, vector<8x8xf32>
    tpu.vector_store %arg2[%c0_41, %c0_42], %190 {strides = array<i32>} : memref<8x8xf32, #tpu.memory_space<vmem>>, vector<8x8xf32>,
    return
  }
}

</mosaic_0001>

<llo_original>
// kernel: tpu_custom_call.1
$region0: #{tpu_custom_call.1}
  #allocation0 [shape = 'u32[]', space=smem, size = 0x4, offset = 0x4, fixed_abs, tag = 'smem constant byte address 0x4 - core index']
  #allocation1 [shape = 'u32[144,128]{1,0:T(1,128)}', space=vmem, size = 0x12000, scoped, tag = 'internal scratch']
  %s0 = inlined_call_operand.vmem [shape: f32[64,8], index: 0, kind: input, shape index: {}]
  %s1 = inlined_call_operand.vmem [shape: f32[40,128], index: 1, kind: input, shape index: {}]
  %s2 = inlined_call_operand.hbm [shape: f32[8,8], index: 2, kind: output, shape index: {}]
  %s3 = sld [smem:[#allocation0]]
  $region18: #{tpu_custom_call.1} parent=0
    _
  %s5 = ssub.s32 1, %s3
  %s6 = scalar_select 0, %s5, %s3
  $region1: #{tpu_custom_call.1} parent=0
    #allocation2 [shape = 'u8[4096]{0}', space=vmem, size = 0x1000, scoped, tag = 'output window, operand 0, single buffered']
    #allocation3 [shape = 's32[1]{0}', space=sflag, size = 0x4, scoped, tag = 'scoped memory for tpu_custom_call.1']
    %7 = vsyncpa [#allocation3], 0
    // Predicated region
    $region2: #{tpu_custom_call.1} parent=1 // pred_check
      _
    $region3: #{tpu_custom_call.1} parent=1 // pred_check_branch
      %9 = sbr.rel (0) target = $region5
    $region4: #{tpu_custom_call.1} parent=1 // pred_region
      _
    $region5: #{tpu_custom_call.1} parent=1 // pred_fallthru
      _
    // Predicated region
    $region6: #{tpu_custom_call.1} parent=1 // pred_check
      _
    $region7: #{tpu_custom_call.1} parent=1 // pred_check_branch
      %11 = sbr.rel (0) target = $region9
    $region8: #{tpu_custom_call.1} parent=1 // pred_region
      _
    $region9: #{tpu_custom_call.1} parent=1 // pred_fallthru
      _
    %v12 = vld [vmem:[%s1] sm:$0xff]
    %v13 = vld [vmem:[%s1 + $0x8] sm:$0xff]
    %v14 = vld [vmem:[%s1 + $0x10] sm:$0xff]
    %v15 = vld [vmem:[%s1 + $0x18] sm:$0xff]
    %v16 = vld [vmem:[%s1 + $0x20] sm:$0xff]
    %v17 = vld [vmem:[%s1 + $0x2] sm:$0x1]
    %v18 = vld [vmem:[%s1 + $0x3] sm:$0x1]
    %v19 = vld [vmem:[%s0] sm:$0xff]
    %v20 = vld [vmem:[%s0 + $0x8] sm:$0xff]
    %v21 = vld [vmem:[%s0 + $0x10] sm:$0xff]
    %v22 = vld [vmem:[%s0 + $0x18] sm:$0xff]
    %v23 = vld [vmem:[%s0 + $0x20] sm:$0xff]
    %v24 = vld [vmem:[%s0 + $0x28] sm:$0xff]
    %v25 = vld [vmem:[%s0 + $0x30] sm:$0xff]
    %v26 = vld [vmem:[%s0 + $0x38] sm:$0xff]
    %vm27 = vcmask 64512
    %v29 = vsel %vm27, %v19, 0
    %v32 = vsel %vm27, %v20, 0
    %v35 = vsel %vm27, %v21, 0
    %v38 = vsel %vm27, %v22, 0
    %v41 = vsel %vm27, %v23, 0
    %v44 = vsel %vm27, %v24, 0
    %v47 = vsel %vm27, %v25, 0
    %v50 = vsel %vm27, %v26, 0
    %52 = vmatprep.subr.mxu0 0.0
    %53 = vmatpush1.msra.mxu0 0.0
    %54 = vmatprep.subr.mxu0 0.0
    %55 = vmatpush1.msra.mxu0 0.0
    %56 = vmatprep.subr.mxu0 0.0
    %57 = vmatpush1.msra.mxu0 0.0
    %58 = vmatprep.subr.mxu0 0.0
    %59 = vmatpush1.msra.mxu0 0.0
    %60 = vmatprep.subr.mxu0 0.0
    %61 = vmatpush1.msra.mxu0 0.0
    %62 = vmatprep.subr.mxu0 0.0
    %63 = vmatpush1.msra.mxu0 0.0
    %64 = vmatprep.subr.mxu0 0.0
    %65 = vmatpush1.msra.mxu0 0.0
    %66 = vmatprep.subr.mxu0 0.0
    %67 = vmatpush1.msra.mxu0 0.0
    %68 = vmatprep.subr.mxu0 0.0
    %69 = vmatpush1.msra.mxu0 0.0
    %70 = vmatprep.subr.mxu0 0.0
    %71 = vmatpush1.msra.mxu0 0.0
    %72 = vmatprep.subr.mxu0 0.0
    %73 = vmatpush1.msra.mxu0 0.0
    %74 = vmatprep.subr.mxu0 0.0
    %75 = vmatpush1.msra.mxu0 0.0
    %76 = vmatprep.subr.mxu0 0.0
    %77 = vmatpush1.msra.mxu0 0.0
    %78 = vmatprep.subr.mxu0 0.0
    %79 = vmatpush1.msra.mxu0 0.0
    %80 = vmatprep.subr.mxu0 0.0
    %81 = vmatpush1.msra.mxu0 0.0
    %82 = vmatprep.subr.mxu0 0.0
    %83 = vmatpush1.msra.mxu0 %v12
    %84 = vmatprep.subr.mxu0 0.0
    %85 = vmatpush2.msra.mxu0 0.0
    %86 = vmatprep.subr.mxu0 0.0
    %87 = vmatpush2.msra.mxu0 0.0
    %88 = vmatprep.subr.mxu0 0.0
    %89 = vmatpush2.msra.mxu0 0.0
    %90 = vmatprep.subr.mxu0 0.0
    %91 = vmatpush2.msra.mxu0 0.0
    %92 = vmatprep.subr.mxu0 0.0
    %93 = vmatpush2.msra.mxu0 0.0
    %94 = vmatprep.subr.mxu0 0.0
    %95 = vmatpush2.msra.mxu0 0.0
    %96 = vmatprep.subr.mxu0 0.0
    %97 = vmatpush2.msra.mxu0 0.0
    %98 = vmatprep.subr.mxu0 0.0
    %99 = vmatpush2.msra.mxu0 0.0
    %100 = vmatprep.subr.mxu0 0.0
    %101 = vmatpush2.msra.mxu0 0.0
    %102 = vmatprep.subr.mxu0 0.0
    %103 = vmatpush2.msra.mxu0 0.0
    %104 = vmatprep.subr.mxu0 0.0
    %105 = vmatpush2.msra.mxu0 0.0
    %106 = vmatprep.subr.mxu0 0.0
    %107 = vmatpush2.msra.mxu0 0.0
    %108 = vmatprep.subr.mxu0 0.0
    %109 = vmatpush2.msra.mxu0 0.0
    %110 = vmatprep.subr.mxu0 0.0
    %111 = vmatpush2.msra.mxu0 0.0
    %112 = vmatprep.subr.mxu0 0.0
    %113 = vmatpush2.msra.mxu0 0.0
    %114 = vmatprep.subr.mxu0 0.0
    %115 = vmatpush2.msra.mxu0 0.0
    %116 = vmatprep.mubr.f32.mxu0 0.0
    %117 = vmatmul.mubr.f32.gmra.mxu0 %v29
    %v118 = vpop.f32.mrf.mxu0
    %v119 = vadd.f32 0.0, %v118
    %v120 = vpop.f32.mrf.mxu0
    %121 = vmatprep.mubr.f32.mxu0 0.0
    %122 = vmatmul.mubr.f32.gmra.mxu0 %v32
    %v123 = vpop.f32.mrf.mxu0
    %v124 = vadd.f32 0.0, %v123
    %v125 = vpop.f32.mrf.mxu0
    %126 = vmatprep.mubr.f32.mxu0 0.0
    %127 = vmatmul.mubr.f32.gmra.mxu0 %v35
    %v128 = vpop.f32.mrf.mxu0
    %v129 = vadd.f32 0.0, %v128
    %v130 = vpop.f32.mrf.mxu0
    %131 = vmatprep.mubr.f32.mxu0 0.0
    %132 = vmatmul.mubr.f32.gmra.mxu0 %v38
    %v133 = vpop.f32.mrf.mxu0
    %v134 = vadd.f32 0.0, %v133
    %v135 = vpop.f32.mrf.mxu0
    %136 = vmatprep.mubr.f32.mxu0 0.0
    %137 = vmatmul.mubr.f32.gmra.mxu0 %v41
    %v138 = vpop.f32.mrf.mxu0
    %v139 = vadd.f32 0.0, %v138
    %v140 = vpop.f32.mrf.mxu0
    %141 = vmatprep.mubr.f32.mxu0 0.0
    %142 = vmatmul.mubr.f32.gmra.mxu0 %v44
    %v143 = vpop.f32.mrf.mxu0
    %v144 = vadd.f32 0.0, %v143
    %v145 = vpop.f32.mrf.mxu0
    %146 = vmatprep.mubr.f32.mxu0 0.0
    %147 = vmatmul.mubr.f32.gmra.mxu0 %v47
    %v148 = vpop.f32.mrf.mxu0
    %v149 = vadd.f32 0.0, %v148
    %v150 = vpop.f32.mrf.mxu0
    %151 = vmatprep.mubr.f32.mxu0 0.0
    %152 = vmatmul.mubr.f32.gmra.mxu0 %v50
    %v153 = vpop.f32.mrf.mxu0
    %v154 = vadd.f32 0.0, %v153
    %v155 = vpop.f32.mrf.mxu0
    %156 = vdwg.mxu0
    %vm157 = vcmask 261120
    %v159 = vsel %vm157, 0.0, 0
    %161 = vmatprep.subr.mxu0 0.0
    %162 = vmatpush1.msra.mxu0 0.0
    %163 = vmatprep.subr.mxu0 0.0
    %164 = vmatpush1.msra.mxu0 0.0
    %165 = vmatprep.subr.mxu0 0.0
    %166 = vmatpush1.msra.mxu0 0.0
    %167 = vmatprep.subr.mxu0 0.0
    %168 = vmatpush1.msra.mxu0 0.0
    %169 = vmatprep.subr.mxu0 0.0
    %170 = vmatpush1.msra.mxu0 0.0
    %171 = vmatprep.subr.mxu0 0.0
    %172 = vmatpush1.msra.mxu0 0.0
    %173 = vmatprep.subr.mxu0 0.0
    %174 = vmatpush1.msra.mxu0 0.0
    %175 = vmatprep.subr.mxu0 0.0
    %176 = vmatpush1.msra.mxu0 0.0
    %177 = vmatprep.subr.mxu0 0.0
    %178 = vmatpush1.msra.mxu0 0.0
    %179 = vmatprep.subr.mxu0 0.0
    %180 = vmatpush1.msra.mxu0 0.0
    %181 = vmatprep.subr.mxu0 0.0
    %182 = vmatpush1.msra.mxu0 0.0
    %183 = vmatprep.subr.mxu0 0.0
    %184 = vmatpush1.msra.mxu0 0.0
    %185 = vmatprep.subr.mxu0 0.0
    %186 = vmatpush1.msra.mxu0 %v16
    %187 = vmatprep.subr.mxu0 0.0
    %188 = vmatpush1.msra.mxu0 %v15
    %189 = vmatprep.subr.mxu0 0.0
    %190 = vmatpush1.msra.mxu0 %v14
    %191 = vmatprep.subr.mxu0 0.0
    %192 = vmatpush1.msra.mxu0 %v13
    %193 = vmatprep.subr.mxu0 0.0
    %194 = vmatpush2.msra.mxu0 0.0
    %195 = vmatprep.subr.mxu0 0.0
    %196 = vmatpush2.msra.mxu0 0.0
    %197 = vmatprep.subr.mxu0 0.0
    %198 = vmatpush2.msra.mxu0 0.0
    %199 = vmatprep.subr.mxu0 0.0
    %200 = vmatpush2.msra.mxu0 0.0
    %201 = vmatprep.subr.mxu0 0.0
    %202 = vmatpush2.msra.mxu0 0.0
    %203 = vmatprep.subr.mxu0 0.0
    %204 = vmatpush2.msra.mxu0 0.0
    %205 = vmatprep.subr.mxu0 0.0
    %206 = vmatpush2.msra.mxu0 0.0
    %207 = vmatprep.subr.mxu0 0.0
    %208 = vmatpush2.msra.mxu0 0.0
    %209 = vmatprep.subr.mxu0 0.0
    %210 = vmatpush2.msra.mxu0 0.0
    %211 = vmatprep.subr.mxu0 0.0
    %212 = vmatpush2.msra.mxu0 0.0
    %213 = vmatprep.subr.mxu0 0.0
    %214 = vmatpush2.msra.mxu0 0.0
    %215 = vmatprep.subr.mxu0 0.0
    %216 = vmatpush2.msra.mxu0 0.0
    %217 = vmatprep.subr.mxu0 0.0
    %218 = vmatpush2.msra.mxu0 0.0
    %219 = vmatprep.subr.mxu0 0.0
    %220 = vmatpush2.msra.mxu0 0.0
    %221 = vmatprep.subr.mxu0 0.0
    %222 = vmatpush2.msra.mxu0 0.0
    %223 = vmatprep.subr.mxu0 0.0
    %224 = vmatpush2.msra.mxu0 0.0
    %225 = vmatprep.mubr.f32.mxu0 0.0
    %226 = vmatmul.mubr.f32.gmra.mxu0 %v159
    %v227 = vpop.f32.mrf.mxu0
    %v228 = vadd.f32 0.0, %v227
    %v229 = vpop.f32.mrf.mxu0
    %230 = vdwg.mxu0
    %v231 = vadd.f32 %v119, %v228
    %v232 = vxor.u32 %v231, 2147483648
    %v233 = vmul.f32 %v232, 1.442695
    %v234 = vpow.pop %v233
    %v235 = vadd.f32 %v234, 1.0
    %v236 = vrcp.pop %v235
    %v237 = vmul.f32 1.0, %v236
    %v238 = vmul.f32 %v237, 2.0
    %v239 = vsub.f32 %v238, 1.0
    %v240 = vmul.f32 %v237, 0.0
    %242 = vrot.lane.b32.xlu0 %v239, 64
    %v243 = vpop.permute.xlu0 %242
    %v245 = vmul.f32 %v237, %v243
    %247 = vrot.lane.b32.xlu0 %v245, 32
    %v248 = vpop.permute.xlu0 %247
    %v250 = vadd.f32 %v240, %v248
    %v251 = vtanh.pop %v250
    %253 = vrot.lane.b32.xlu0 %v251, 64
    %v254 = vpop.permute.xlu0 %253
    %v256 = vmul.f32 %v237, %v254
    %258 = vrot.lane.b32.xlu0 %v256, 32
    %v259 = vpop.permute.xlu0 %258
    %v260 = vsel %vm157, %v259, 0
    %262 = vmatprep.subr.mxu0 0.0
    %263 = vmatpush1.msra.mxu0 0.0
    %264 = vmatprep.subr.mxu0 0.0
    %265 = vmatpush1.msra.mxu0 0.0
    %266 = vmatprep.subr.mxu0 0.0
    %267 = vmatpush1.msra.mxu0 0.0
    %268 = vmatprep.subr.mxu0 0.0
    %269 = vmatpush1.msra.mxu0 0.0
    %270 = vmatprep.subr.mxu0 0.0
    %271 = vmatpush1.msra.mxu0 0.0
    %272 = vmatprep.subr.mxu0 0.0
    %273 = vmatpush1.msra.mxu0 0.0
    %274 = vmatprep.subr.mxu0 0.0
    %275 = vmatpush1.msra.mxu0 0.0
    %276 = vmatprep.subr.mxu0 0.0
    %277 = vmatpush1.msra.mxu0 0.0
    %278 = vmatprep.subr.mxu0 0.0
    %279 = vmatpush1.msra.mxu0 0.0
    %280 = vmatprep.subr.mxu0 0.0
    %281 = vmatpush1.msra.mxu0 0.0
    %282 = vmatprep.subr.mxu0 0.0
    %283 = vmatpush1.msra.mxu0 0.0
    %284 = vmatprep.subr.mxu0 0.0
    %285 = vmatpush1.msra.mxu0 0.0
    %286 = vmatprep.subr.mxu0 0.0
    %287 = vmatpush1.msra.mxu0 %v16
    %288 = vmatprep.subr.mxu0 0.0
    %289 = vmatpush1.msra.mxu0 %v15
    %290 = vmatprep.subr.mxu0 0.0
    %291 = vmatpush1.msra.mxu0 %v14
    %292 = vmatprep.subr.mxu0 0.0
    %293 = vmatpush1.msra.mxu0 %v13
    %294 = vmatprep.subr.mxu0 0.0
    %295 = vmatpush2.msra.mxu0 0.0
    %296 = vmatprep.subr.mxu0 0.0
    %297 = vmatpush2.msra.mxu0 0.0
    %298 = vmatprep.subr.mxu0 0.0
    %299 = vmatpush2.msra.mxu0 0.0
    %300 = vmatprep.subr.mxu0 0.0
    %301 = vmatpush2.msra.mxu0 0.0
    %302 = vmatprep.subr.mxu0 0.0
    %303 = vmatpush2.msra.mxu0 0.0
    %304 = vmatprep.subr.mxu0 0.0
    %305 = vmatpush2.msra.mxu0 0.0
    %306 = vmatprep.subr.mxu0 0.0
    %307 = vmatpush2.msra.mxu0 0.0
    %308 = vmatprep.subr.mxu0 0.0
    %309 = vmatpush2.msra.mxu0 0.0
    %310 = vmatprep.subr.mxu0 0.0
    %311 = vmatpush2.msra.mxu0 0.0
    %312 = vmatprep.subr.mxu0 0.0
    %313 = vmatpush2.msra.mxu0 0.0
    %314 = vmatprep.subr.mxu0 0.0
    %315 = vmatpush2.msra.mxu0 0.0
    %316 = vmatprep.subr.mxu0 0.0
    %317 = vmatpush2.msra.mxu0 0.0
    %318 = vmatprep.subr.mxu0 0.0
    %319 = vmatpush2.msra.mxu0 0.0
    %320 = vmatprep.subr.mxu0 0.0
    %321 = vmatpush2.msra.mxu0 0.0
    %322 = vmatprep.subr.mxu0 0.0
    %323 = vmatpush2.msra.mxu0 0.0
    %324 = vmatprep.subr.mxu0 0.0
    %325 = vmatpush2.msra.mxu0 0.0
    %326 = vmatprep.mubr.f32.mxu0 0.0
    %327 = vmatmul.mubr.f32.gmra.mxu0 %v260
    %v328 = vpop.f32.mrf.mxu0
    %v329 = vadd.f32 0.0, %v328
    %v330 = vpop.f32.mrf.mxu0
    %331 = vdwg.mxu0
    %v332 = vadd.f32 %v124, %v329
    %v333 = vxor.u32 %v332, 2147483648
    %v334 = vmul.f32 %v333, 1.442695
    %v335 = vpow.pop %v334
    %v336 = vadd.f32 %v335, 1.0
    %v337 = vrcp.pop %v336
    %v338 = vmul.f32 1.0, %v337
    %v339 = vmul.f32 %v338, 2.0
    %v340 = vsub.f32 %v339, 1.0
    %v341 = vmul.f32 %v338, %v250
    %343 = vrot.lane.b32.xlu0 %v340, 64
    %v344 = vpop.permute.xlu0 %343
    %v346 = vmul.f32 %v338, %v344
    %348 = vrot.lane.b32.xlu0 %v346, 32
    %v349 = vpop.permute.xlu0 %348
    %v351 = vadd.f32 %v341, %v349
    %v352 = vtanh.pop %v351
    %354 = vrot.lane.b32.xlu0 %v352, 64
    %v355 = vpop.permute.xlu0 %354
    %v357 = vmul.f32 %v338, %v355
    %359 = vrot.lane.b32.xlu0 %v357, 32
    %v360 = vpop.permute.xlu0 %359
    %v361 = vsel %vm157, %v360, 0
    %363 = vmatprep.subr.mxu0 0.0
    %364 = vmatpush1.msra.mxu0 0.0
    %365 = vmatprep.subr.mxu0 0.0
    %366 = vmatpush1.msra.mxu0 0.0
    %367 = vmatprep.subr.mxu0 0.0
    %368 = vmatpush1.msra.mxu0 0.0
    %369 = vmatprep.subr.mxu0 0.0
    %370 = vmatpush1.msra.mxu0 0.0
    %371 = vmatprep.subr.mxu0 0.0
    %372 = vmatpush1.msra.mxu0 0.0
    %373 = vmatprep.subr.mxu0 0.0
    %374 = vmatpush1.msra.mxu0 0.0
    %375 = vmatprep.subr.mxu0 0.0
    %376 = vmatpush1.msra.mxu0 0.0
    %377 = vmatprep.subr.mxu0 0.0
    %378 = vmatpush1.msra.mxu0 0.0
    %379 = vmatprep.subr.mxu0 0.0
    %380 = vmatpush1.msra.mxu0 0.0
    %381 = vmatprep.subr.mxu0 0.0
    %382 = vmatpush1.msra.mxu0 0.0
    %383 = vmatprep.subr.mxu0 0.0
    %384 = vmatpush1.msra.mxu0 0.0
    %385 = vmatprep.subr.mxu0 0.0
    %386 = vmatpush1.msra.mxu0 0.0
    %387 = vmatprep.subr.mxu0 0.0
    %388 = vmatpush1.msra.mxu0 %v16
    %389 = vmatprep.subr.mxu0 0.0
    %390 = vmatpush1.msra.mxu0 %v15
    %391 = vmatprep.subr.mxu0 0.0
    %392 = vmatpush1.msra.mxu0 %v14
    %393 = vmatprep.subr.mxu0 0.0
    %394 = vmatpush1.msra.mxu0 %v13
    %395 = vmatprep.subr.mxu0 0.0
    %396 = vmatpush2.msra.mxu0 0.0
    %397 = vmatprep.subr.mxu0 0.0
    %398 = vmatpush2.msra.mxu0 0.0
    %399 = vmatprep.subr.mxu0 0.0
    %400 = vmatpush2.msra.mxu0 0.0
    %401 = vmatprep.subr.mxu0 0.0
    %402 = vmatpush2.msra.mxu0 0.0
    %403 = vmatprep.subr.mxu0 0.0
    %404 = vmatpush2.msra.mxu0 0.0
    %405 = vmatprep.subr.mxu0 0.0
    %406 = vmatpush2.msra.mxu0 0.0
    %407 = vmatprep.subr.mxu0 0.0
    %408 = vmatpush2.msra.mxu0 0.0
    %409 = vmatprep.subr.mxu0 0.0
    %410 = vmatpush2.msra.mxu0 0.0
    %411 = vmatprep.subr.mxu0 0.0
    %412 = vmatpush2.msra.mxu0 0.0
    %413 = vmatprep.subr.mxu0 0.0
    %414 = vmatpush2.msra.mxu0 0.0
    %415 = vmatprep.subr.mxu0 0.0
    %416 = vmatpush2.msra.mxu0 0.0
    %417 = vmatprep.subr.mxu0 0.0
    %418 = vmatpush2.msra.mxu0 0.0
    %419 = vmatprep.subr.mxu0 0.0
    %420 = vmatpush2.msra.mxu0 0.0
    %421 = vmatprep.subr.mxu0 0.0
    %422 = vmatpush2.msra.mxu0 0.0
    %423 = vmatprep.subr.mxu0 0.0
    %424 = vmatpush2.msra.mxu0 0.0
    %425 = vmatprep.subr.mxu0 0.0
    %426 = vmatpush2.msra.mxu0 0.0
    %427 = vmatprep.mubr.f32.mxu0 0.0
    %428 = vmatmul.mubr.f32.gmra.mxu0 %v361
    %v429 = vpop.f32.mrf.mxu0
    %v430 = vadd.f32 0.0, %v429
    %v431 = vpop.f32.mrf.mxu0
    %432 = vdwg.mxu0
    %v433 = vadd.f32 %v129, %v430
    %v434 = vxor.u32 %v433, 2147483648
    %v435 = vmul.f32 %v434, 1.442695
    %v436 = vpow.pop %v435
    %v437 = vadd.f32 %v436, 1.0
    %v438 = vrcp.pop %v437
    %v439 = vmul.f32 1.0, %v438
    %v440 = vmul.f32 %v439, 2.0
    %v441 = vsub.f32 %v440, 1.0
    %v442 = vmul.f32 %v439, %v351
    %444 = vrot.lane.b32.xlu0 %v441, 64
    %v445 = vpop.permute.xlu0 %444
    %v447 = vmul.f32 %v439, %v445
    %449 = vrot.lane.b32.xlu0 %v447, 32
    %v450 = vpop.permute.xlu0 %449
    %v452 = vadd.f32 %v442, %v450
    %v453 = vtanh.pop %v452
    %455 = vrot.lane.b32.xlu0 %v453, 64
    %v456 = vpop.permute.xlu0 %455
    %v458 = vmul.f32 %v439, %v456
    %460 = vrot.lane.b32.xlu0 %v458, 32
    %v461 = vpop.permute.xlu0 %460
    %v462 = vsel %vm157, %v461, 0
    %464 = vmatprep.subr.mxu0 0.0
    %465 = vmatpush1.msra.mxu0 0.0
    %466 = vmatprep.subr.mxu0 0.0
    %467 = vmatpush1.msra.mxu0 0.0
    %468 = vmatprep.subr.mxu0 0.0
    %469 = vmatpush1.msra.mxu0 0.0
    %470 = vmatprep.subr.mxu0 0.0
    %471 = vmatpush1.msra.mxu0 0.0
    %472 = vmatprep.subr.mxu0 0.0
    %473 = vmatpush1.msra.mxu0 0.0
    %474 = vmatprep.subr.mxu0 0.0
    %475 = vmatpush1.msra.mxu0 0.0
    %476 = vmatprep.subr.mxu0 0.0
    %477 = vmatpush1.msra.mxu0 0.0
    %478 = vmatprep.subr.mxu0 0.0
    %479 = vmatpush1.msra.mxu0 0.0
    %480 = vmatprep.subr.mxu0 0.0
    %481 = vmatpush1.msra.mxu0 0.0
    %482 = vmatprep.subr.mxu0 0.0
    %483 = vmatpush1.msra.mxu0 0.0
    %484 = vmatprep.subr.mxu0 0.0
    %485 = vmatpush1.msra.mxu0 0.0
    %486 = vmatprep.subr.mxu0 0.0
    %487 = vmatpush1.msra.mxu0 0.0
    %488 = vmatprep.subr.mxu0 0.0
    %489 = vmatpush1.msra.mxu0 %v16
    %490 = vmatprep.subr.mxu0 0.0
    %491 = vmatpush1.msra.mxu0 %v15
    %492 = vmatprep.subr.mxu0 0.0
    %493 = vmatpush1.msra.mxu0 %v14
    %494 = vmatprep.subr.mxu0 0.0
    %495 = vmatpush1.msra.mxu0 %v13
    %496 = vmatprep.subr.mxu0 0.0
    %497 = vmatpush2.msra.mxu0 0.0
    %498 = vmatprep.subr.mxu0 0.0
    %499 = vmatpush2.msra.mxu0 0.0
    %500 = vmatprep.subr.mxu0 0.0
    %501 = vmatpush2.msra.mxu0 0.0
    %502 = vmatprep.subr.mxu0 0.0
    %503 = vmatpush2.msra.mxu0 0.0
    %504 = vmatprep.subr.mxu0 0.0
    %505 = vmatpush2.msra.mxu0 0.0
    %506 = vmatprep.subr.mxu0 0.0
    %507 = vmatpush2.msra.mxu0 0.0
    %508 = vmatprep.subr.mxu0 0.0
    %509 = vmatpush2.msra.mxu0 0.0
    %510 = vmatprep.subr.mxu0 0.0
    %511 = vmatpush2.msra.mxu0 0.0
    %512 = vmatprep.subr.mxu0 0.0
    %513 = vmatpush2.msra.mxu0 0.0
    %514 = vmatprep.subr.mxu0 0.0
    %515 = vmatpush2.msra.mxu0 0.0
    %516 = vmatprep.subr.mxu0 0.0
    %517 = vmatpush2.msra.mxu0 0.0
    %518 = vmatprep.subr.mxu0 0.0
    %519 = vmatpush2.msra.mxu0 0.0
    %520 = vmatprep.subr.mxu0 0.0
    %521 = vmatpush2.msra.mxu0 0.0
    %522 = vmatprep.subr.mxu0 0.0
    %523 = vmatpush2.msra.mxu0 0.0
    %524 = vmatprep.subr.mxu0 0.0
    %525 = vmatpush2.msra.mxu0 0.0
    %526 = vmatprep.subr.mxu0 0.0
    %527 = vmatpush2.msra.mxu0 0.0
    %528 = vmatprep.mubr.f32.mxu0 0.0
    %529 = vmatmul.mubr.f32.gmra.mxu0 %v462
    %v530 = vpop.f32.mrf.mxu0
    %v531 = vadd.f32 0.0, %v530
    %v532 = vpop.f32.mrf.mxu0
    %533 = vdwg.mxu0
    %v534 = vadd.f32 %v134, %v531
    %v535 = vxor.u32 %v534, 2147483648
    %v536 = vmul.f32 %v535, 1.442695
    %v537 = vpow.pop %v536
    %v538 = vadd.f32 %v537, 1.0
    %v539 = vrcp.pop %v538
    %v540 = vmul.f32 1.0, %v539
    %v541 = vmul.f32 %v540, 2.0
    %v542 = vsub.f32 %v541, 1.0
    %v543 = vmul.f32 %v540, %v452
    %545 = vrot.lane.b32.xlu0 %v542, 64
    %v546 = vpop.permute.xlu0 %545
    %v548 = vmul.f32 %v540, %v546
    %550 = vrot.lane.b32.xlu0 %v548, 32
    %v551 = vpop.permute.xlu0 %550
    %v553 = vadd.f32 %v543, %v551
    %v554 = vtanh.pop %v553
    %556 = vrot.lane.b32.xlu0 %v554, 64
    %v557 = vpop.permute.xlu0 %556
    %v559 = vmul.f32 %v540, %v557
    %561 = vrot.lane.b32.xlu0 %v559, 32
    %v562 = vpop.permute.xlu0 %561
    %v563 = vsel %vm157, %v562, 0
    %565 = vmatprep.subr.mxu0 0.0
    %566 = vmatpush1.msra.mxu0 0.0
    %567 = vmatprep.subr.mxu0 0.0
    %568 = vmatpush1.msra.mxu0 0.0
    %569 = vmatprep.subr.mxu0 0.0
    %570 = vmatpush1.msra.mxu0 0.0
    %571 = vmatprep.subr.mxu0 0.0
    %572 = vmatpush1.msra.mxu0 0.0
    %573 = vmatprep.subr.mxu0 0.0
    %574 = vmatpush1.msra.mxu0 0.0
    %575 = vmatprep.subr.mxu0 0.0
    %576 = vmatpush1.msra.mxu0 0.0
    %577 = vmatprep.subr.mxu0 0.0
    %578 = vmatpush1.msra.mxu0 0.0
    %579 = vmatprep.subr.mxu0 0.0
    %580 = vmatpush1.msra.mxu0 0.0
    %581 = vmatprep.subr.mxu0 0.0
    %582 = vmatpush1.msra.mxu0 0.0
    %583 = vmatprep.subr.mxu0 0.0
    %584 = vmatpush1.msra.mxu0 0.0
    %585 = vmatprep.subr.mxu0 0.0
    %586 = vmatpush1.msra.mxu0 0.0
    %587 = vmatprep.subr.mxu0 0.0
    %588 = vmatpush1.msra.mxu0 0.0
    %589 = vmatprep.subr.mxu0 0.0
    %590 = vmatpush1.msra.mxu0 %v16
    %591 = vmatprep.subr.mxu0 0.0
    %592 = vmatpush1.msra.mxu0 %v15
    %593 = vmatprep.subr.mxu0 0.0
    %594 = vmatpush1.msra.mxu0 %v14
    %595 = vmatprep.subr.mxu0 0.0
    %596 = vmatpush1.msra.mxu0 %v13
    %597 = vmatprep.subr.mxu0 0.0
    %598 = vmatpush2.msra.mxu0 0.0
    %599 = vmatprep.subr.mxu0 0.0
    %600 = vmatpush2.msra.mxu0 0.0
    %601 = vmatprep.subr.mxu0 0.0
    %602 = vmatpush2.msra.mxu0 0.0
    %603 = vmatprep.subr.mxu0 0.0
    %604 = vmatpush2.msra.mxu0 0.0
    %605 = vmatprep.subr.mxu0 0.0
    %606 = vmatpush2.msra.mxu0 0.0
    %607 = vmatprep.subr.mxu0 0.0
    %608 = vmatpush2.msra.mxu0 0.0
    %609 = vmatprep.subr.mxu0 0.0
    %610 = vmatpush2.msra.mxu0 0.0
    %611 = vmatprep.subr.mxu0 0.0
    %612 = vmatpush2.msra.mxu0 0.0
    %613 = vmatprep.subr.mxu0 0.0
    %614 = vmatpush2.msra.mxu0 0.0
    %615 = vmatprep.subr.mxu0 0.0
    %616 = vmatpush2.msra.mxu0 0.0
    %617 = vmatprep.subr.mxu0 0.0
    %618 = vmatpush2.msra.mxu0 0.0
    %619 = vmatprep.subr.mxu0 0.0
    %620 = vmatpush2.msra.mxu0 0.0
    %621 = vmatprep.subr.mxu0 0.0
    %622 = vmatpush2.msra.mxu0 0.0
    %623 = vmatprep.subr.mxu0 0.0
    %624 = vmatpush2.msra.mxu0 0.0
    %625 = vmatprep.subr.mxu0 0.0
    %626 = vmatpush2.msra.mxu0 0.0
    %627 = vmatprep.subr.mxu0 0.0
    %628 = vmatpush2.msra.mxu0 0.0
    %629 = vmatprep.mubr.f32.mxu0 0.0
    %630 = vmatmul.mubr.f32.gmra.mxu0 %v563
    %v631 = vpop.f32.mrf.mxu0
    %v632 = vadd.f32 0.0, %v631
    %v633 = vpop.f32.mrf.mxu0
    %634 = vdwg.mxu0
    %v635 = vadd.f32 %v139, %v632
    %v636 = vxor.u32 %v635, 2147483648
    %v637 = vmul.f32 %v636, 1.442695
    %v638 = vpow.pop %v637
    %v639 = vadd.f32 %v638, 1.0
    %v640 = vrcp.pop %v639
    %v641 = vmul.f32 1.0, %v640
    %v642 = vmul.f32 %v641, 2.0
    %v643 = vsub.f32 %v642, 1.0
    %v644 = vmul.f32 %v641, %v553
    %646 = vrot.lane.b32.xlu0 %v643, 64
    %v647 = vpop.permute.xlu0 %646
    %v649 = vmul.f32 %v641, %v647
    %651 = vrot.lane.b32.xlu0 %v649, 32
    %v652 = vpop.permute.xlu0 %651
    %v654 = vadd.f32 %v644, %v652
    %v655 = vtanh.pop %v654
    %657 = vrot.lane.b32.xlu0 %v655, 64
    %v658 = vpop.permute.xlu0 %657
    %v660 = vmul.f32 %v641, %v658
    %662 = vrot.lane.b32.xlu0 %v660, 32
    %v663 = vpop.permute.xlu0 %662
    %v664 = vsel %vm157, %v663, 0
    %666 = vmatprep.subr.mxu0 0.0
    %667 = vmatpush1.msra.mxu0 0.0
    %668 = vmatprep.subr.mxu0 0.0
    %669 = vmatpush1.msra.mxu0 0.0
    %670 = vmatprep.subr.mxu0 0.0
    %671 = vmatpush1.msra.mxu0 0.0
    %672 = vmatprep.subr.mxu0 0.0
    %673 = vmatpush1.msra.mxu0 0.0
    %674 = vmatprep.subr.mxu0 0.0
    %675 = vmatpush1.msra.mxu0 0.0
    %676 = vmatprep.subr.mxu0 0.0
    %677 = vmatpush1.msra.mxu0 0.0
    %678 = vmatprep.subr.mxu0 0.0
    %679 = vmatpush1.msra.mxu0 0.0
    %680 = vmatprep.subr.mxu0 0.0
    %681 = vmatpush1.msra.mxu0 0.0
    %682 = vmatprep.subr.mxu0 0.0
    %683 = vmatpush1.msra.mxu0 0.0
    %684 = vmatprep.subr.mxu0 0.0
    %685 = vmatpush1.msra.mxu0 0.0
    %686 = vmatprep.subr.mxu0 0.0
    %687 = vmatpush1.msra.mxu0 0.0
    %688 = vmatprep.subr.mxu0 0.0
    %689 = vmatpush1.msra.mxu0 0.0
    %690 = vmatprep.subr.mxu0 0.0
    %691 = vmatpush1.msra.mxu0 %v16
    %692 = vmatprep.subr.mxu0 0.0
    %693 = vmatpush1.msra.mxu0 %v15
    %694 = vmatprep.subr.mxu0 0.0
    %695 = vmatpush1.msra.mxu0 %v14
    %696 = vmatprep.subr.mxu0 0.0
    %697 = vmatpush1.msra.mxu0 %v13
    %698 = vmatprep.subr.mxu0 0.0
    %699 = vmatpush2.msra.mxu0 0.0
    %700 = vmatprep.subr.mxu0 0.0
    %701 = vmatpush2.msra.mxu0 0.0
    %702 = vmatprep.subr.mxu0 0.0
    %703 = vmatpush2.msra.mxu0 0.0
    %704 = vmatprep.subr.mxu0 0.0
    %705 = vmatpush2.msra.mxu0 0.0
    %706 = vmatprep.subr.mxu0 0.0
    %707 = vmatpush2.msra.mxu0 0.0
    %708 = vmatprep.subr.mxu0 0.0
    %709 = vmatpush2.msra.mxu0 0.0
    %710 = vmatprep.subr.mxu0 0.0
    %711 = vmatpush2.msra.mxu0 0.0
    %712 = vmatprep.subr.mxu0 0.0
    %713 = vmatpush2.msra.mxu0 0.0
    %714 = vmatprep.subr.mxu0 0.0
    %715 = vmatpush2.msra.mxu0 0.0
    %716 = vmatprep.subr.mxu0 0.0
    %717 = vmatpush2.msra.mxu0 0.0
    %718 = vmatprep.subr.mxu0 0.0
    %719 = vmatpush2.msra.mxu0 0.0
    %720 = vmatprep.subr.mxu0 0.0
    %721 = vmatpush2.msra.mxu0 0.0
    %722 = vmatprep.subr.mxu0 0.0
    %723 = vmatpush2.msra.mxu0 0.0
    %724 = vmatprep.subr.mxu0 0.0
    %725 = vmatpush2.msra.mxu0 0.0
    %726 = vmatprep.subr.mxu0 0.0
    %727 = vmatpush2.msra.mxu0 0.0
    %728 = vmatprep.subr.mxu0 0.0
    %729 = vmatpush2.msra.mxu0 0.0
    %730 = vmatprep.mubr.f32.mxu0 0.0
    %731 = vmatmul.mubr.f32.gmra.mxu0 %v664
    %v732 = vpop.f32.mrf.mxu0
    %v733 = vadd.f32 0.0, %v732
    %v734 = vpop.f32.mrf.mxu0
    %735 = vdwg.mxu0
    %v736 = vadd.f32 %v144, %v733
    %v737 = vxor.u32 %v736, 2147483648
    %v738 = vmul.f32 %v737, 1.442695
    %v739 = vpow.pop %v738
    %v740 = vadd.f32 %v739, 1.0
    %v741 = vrcp.pop %v740
    %v742 = vmul.f32 1.0, %v741
    %v743 = vmul.f32 %v742, 2.0
    %v744 = vsub.f32 %v743, 1.0
    %v745 = vmul.f32 %v742, %v654
    %747 = vrot.lane.b32.xlu0 %v744, 64
    %v748 = vpop.permute.xlu0 %747
    %v750 = vmul.f32 %v742, %v748
    %752 = vrot.lane.b32.xlu0 %v750, 32
    %v753 = vpop.permute.xlu0 %752
    %v755 = vadd.f32 %v745, %v753
    %v756 = vtanh.pop %v755
    %758 = vrot.lane.b32.xlu0 %v756, 64
    %v759 = vpop.permute.xlu0 %758
    %v761 = vmul.f32 %v742, %v759
    %763 = vrot.lane.b32.xlu0 %v761, 32
    %v764 = vpop.permute.xlu0 %763
    %v765 = vsel %vm157, %v764, 0
    %767 = vmatprep.subr.mxu0 0.0
    %768 = vmatpush1.msra.mxu0 0.0
    %769 = vmatprep.subr.mxu0 0.0
    %770 = vmatpush1.msra.mxu0 0.0
    %771 = vmatprep.subr.mxu0 0.0
    %772 = vmatpush1.msra.mxu0 0.0
    %773 = vmatprep.subr.mxu0 0.0
    %774 = vmatpush1.msra.mxu0 0.0
    %775 = vmatprep.subr.mxu0 0.0
    %776 = vmatpush1.msra.mxu0 0.0
    %777 = vmatprep.subr.mxu0 0.0
    %778 = vmatpush1.msra.mxu0 0.0
    %779 = vmatprep.subr.mxu0 0.0
    %780 = vmatpush1.msra.mxu0 0.0
    %781 = vmatprep.subr.mxu0 0.0
    %782 = vmatpush1.msra.mxu0 0.0
    %783 = vmatprep.subr.mxu0 0.0
    %784 = vmatpush1.msra.mxu0 0.0
    %785 = vmatprep.subr.mxu0 0.0
    %786 = vmatpush1.msra.mxu0 0.0
    %787 = vmatprep.subr.mxu0 0.0
    %788 = vmatpush1.msra.mxu0 0.0
    %789 = vmatprep.subr.mxu0 0.0
    %790 = vmatpush1.msra.mxu0 0.0
    %791 = vmatprep.subr.mxu0 0.0
    %792 = vmatpush1.msra.mxu0 %v16
    %793 = vmatprep.subr.mxu0 0.0
    %794 = vmatpush1.msra.mxu0 %v15
    %795 = vmatprep.subr.mxu0 0.0
    %796 = vmatpush1.msra.mxu0 %v14
    %797 = vmatprep.subr.mxu0 0.0
    %798 = vmatpush1.msra.mxu0 %v13
    %799 = vmatprep.subr.mxu0 0.0
    %800 = vmatpush2.msra.mxu0 0.0
    %801 = vmatprep.subr.mxu0 0.0
    %802 = vmatpush2.msra.mxu0 0.0
    %803 = vmatprep.subr.mxu0 0.0
    %804 = vmatpush2.msra.mxu0 0.0
    %805 = vmatprep.subr.mxu0 0.0
    %806 = vmatpush2.msra.mxu0 0.0
    %807 = vmatprep.subr.mxu0 0.0
    %808 = vmatpush2.msra.mxu0 0.0
    %809 = vmatprep.subr.mxu0 0.0
    %810 = vmatpush2.msra.mxu0 0.0
    %811 = vmatprep.subr.mxu0 0.0
    %812 = vmatpush2.msra.mxu0 0.0
    %813 = vmatprep.subr.mxu0 0.0
    %814 = vmatpush2.msra.mxu0 0.0
    %815 = vmatprep.subr.mxu0 0.0
    %816 = vmatpush2.msra.mxu0 0.0
    %817 = vmatprep.subr.mxu0 0.0
    %818 = vmatpush2.msra.mxu0 0.0
    %819 = vmatprep.subr.mxu0 0.0
    %820 = vmatpush2.msra.mxu0 0.0
    %821 = vmatprep.subr.mxu0 0.0
    %822 = vmatpush2.msra.mxu0 0.0
    %823 = vmatprep.subr.mxu0 0.0
    %824 = vmatpush2.msra.mxu0 0.0
    %825 = vmatprep.subr.mxu0 0.0
    %826 = vmatpush2.msra.mxu0 0.0
    %827 = vmatprep.subr.mxu0 0.0
    %828 = vmatpush2.msra.mxu0 0.0
    %829 = vmatprep.subr.mxu0 0.0
    %830 = vmatpush2.msra.mxu0 0.0
    %831 = vmatprep.mubr.f32.mxu0 0.0
    %832 = vmatmul.mubr.f32.gmra.mxu0 %v765
    %v833 = vpop.f32.mrf.mxu0
    %v834 = vadd.f32 0.0, %v833
    %v835 = vpop.f32.mrf.mxu0
    %836 = vdwg.mxu0
    %v837 = vadd.f32 %v149, %v834
    %v838 = vxor.u32 %v837, 2147483648
    %v839 = vmul.f32 %v838, 1.442695
    %v840 = vpow.pop %v839
    %v841 = vadd.f32 %v840, 1.0
    %v842 = vrcp.pop %v841
    %v843 = vmul.f32 1.0, %v842
    %v844 = vmul.f32 %v843, 2.0
    %v845 = vsub.f32 %v844, 1.0
    %v846 = vmul.f32 %v843, %v755
    %848 = vrot.lane.b32.xlu0 %v845, 64
    %v849 = vpop.permute.xlu0 %848
    %v851 = vmul.f32 %v843, %v849
    %853 = vrot.lane.b32.xlu0 %v851, 32
    %v854 = vpop.permute.xlu0 %853
    %v856 = vadd.f32 %v846, %v854
    %v857 = vtanh.pop %v856
    %859 = vrot.lane.b32.xlu0 %v857, 64
    %v860 = vpop.permute.xlu0 %859
    %v862 = vmul.f32 %v843, %v860
    %864 = vrot.lane.b32.xlu0 %v862, 32
    %v865 = vpop.permute.xlu0 %864
    %v866 = vsel %vm157, %v865, 0
    %868 = vmatprep.subr.mxu0 0.0
    %869 = vmatpush1.msra.mxu0 0.0
    %870 = vmatprep.subr.mxu0 0.0
    %871 = vmatpush1.msra.mxu0 0.0
    %872 = vmatprep.subr.mxu0 0.0
    %873 = vmatpush1.msra.mxu0 0.0
    %874 = vmatprep.subr.mxu0 0.0
    %875 = vmatpush1.msra.mxu0 0.0
    %876 = vmatprep.subr.mxu0 0.0
    %877 = vmatpush1.msra.mxu0 0.0
    %878 = vmatprep.subr.mxu0 0.0
    %879 = vmatpush1.msra.mxu0 0.0
    %880 = vmatprep.subr.mxu0 0.0
    %881 = vmatpush1.msra.mxu0 0.0
    %882 = vmatprep.subr.mxu0 0.0
    %883 = vmatpush1.msra.mxu0 0.0
    %884 = vmatprep.subr.mxu0 0.0
    %885 = vmatpush1.msra.mxu0 0.0
    %886 = vmatprep.subr.mxu0 0.0
    %887 = vmatpush1.msra.mxu0 0.0
    %888 = vmatprep.subr.mxu0 0.0
    %889 = vmatpush1.msra.mxu0 0.0
    %890 = vmatprep.subr.mxu0 0.0
    %891 = vmatpush1.msra.mxu0 0.0
    %892 = vmatprep.subr.mxu0 0.0
    %893 = vmatpush1.msra.mxu0 %v16
    %894 = vmatprep.subr.mxu0 0.0
    %895 = vmatpush1.msra.mxu0 %v15
    %896 = vmatprep.subr.mxu0 0.0
    %897 = vmatpush1.msra.mxu0 %v14
    %898 = vmatprep.subr.mxu0 0.0
    %899 = vmatpush1.msra.mxu0 %v13
    %900 = vmatprep.subr.mxu0 0.0
    %901 = vmatpush2.msra.mxu0 0.0
    %902 = vmatprep.subr.mxu0 0.0
    %903 = vmatpush2.msra.mxu0 0.0
    %904 = vmatprep.subr.mxu0 0.0
    %905 = vmatpush2.msra.mxu0 0.0
    %906 = vmatprep.subr.mxu0 0.0
    %907 = vmatpush2.msra.mxu0 0.0
    %908 = vmatprep.subr.mxu0 0.0
    %909 = vmatpush2.msra.mxu0 0.0
    %910 = vmatprep.subr.mxu0 0.0
    %911 = vmatpush2.msra.mxu0 0.0
    %912 = vmatprep.subr.mxu0 0.0
    %913 = vmatpush2.msra.mxu0 0.0
    %914 = vmatprep.subr.mxu0 0.0
    %915 = vmatpush2.msra.mxu0 0.0
    %916 = vmatprep.subr.mxu0 0.0
    %917 = vmatpush2.msra.mxu0 0.0
    %918 = vmatprep.subr.mxu0 0.0
    %919 = vmatpush2.msra.mxu0 0.0
    %920 = vmatprep.subr.mxu0 0.0
    %921 = vmatpush2.msra.mxu0 0.0
    %922 = vmatprep.subr.mxu0 0.0
    %923 = vmatpush2.msra.mxu0 0.0
    %924 = vmatprep.subr.mxu0 0.0
    %925 = vmatpush2.msra.mxu0 0.0
    %926 = vmatprep.subr.mxu0 0.0
    %927 = vmatpush2.msra.mxu0 0.0
    %928 = vmatprep.subr.mxu0 0.0
    %929 = vmatpush2.msra.mxu0 0.0
    %930 = vmatprep.subr.mxu0 0.0
    %931 = vmatpush2.msra.mxu0 0.0
    %932 = vmatprep.mubr.f32.mxu0 0.0
    %933 = vmatmul.mubr.f32.gmra.mxu0 %v866
    %v934 = vpop.f32.mrf.mxu0
    %v935 = vadd.f32 0.0, %v934
    %v936 = vpop.f32.mrf.mxu0
    %937 = vdwg.mxu0
    %v938 = vadd.f32 %v154, %v935
    %v939 = vxor.u32 %v938, 2147483648
    %v940 = vmul.f32 %v939, 1.442695
    %v941 = vpow.pop %v940
    %v942 = vadd.f32 %v941, 1.0
    %v943 = vrcp.pop %v942
    %v944 = vmul.f32 1.0, %v943
    %v945 = vmul.f32 %v944, 2.0
    %v946 = vsub.f32 %v945, 1.0
    %v947 = vmul.f32 %v944, %v856
    %949 = vrot.lane.b32.xlu0 %v946, 64
    %v950 = vpop.permute.xlu0 %949
    %v952 = vmul.f32 %v944, %v950
    %954 = vrot.lane.b32.xlu0 %v952, 32
    %v955 = vpop.permute.xlu0 %954
    %v957 = vadd.f32 %v947, %v955
    %v958 = vtanh.pop %v957
    %960 = vrot.lane.b32.xlu0 %v958, 64
    %v961 = vpop.permute.xlu0 %960
    %v963 = vmul.f32 %v944, %v961
    %v964 = vlaneseq
    %v965 = vshrl.u32 %v964, 7
    %v966 = vsub.s32 0, %v965
    %v967 = vrot.slane %v17, %v966
    %969 = vrot.lane.b32.xlu0 %v967, 96
    %v970 = vpop.permute.xlu0 %969
    %v972 = vmul.f32 %v256, %v970
    %v973 = vmul.f32 %v357, %v970
    %v974 = vmul.f32 %v458, %v970
    %v975 = vmul.f32 %v559, %v970
    %v976 = vmul.f32 %v660, %v970
    %v977 = vmul.f32 %v761, %v970
    %v978 = vmul.f32 %v862, %v970
    %v979 = vmul.f32 %v963, %v970
    %988 = vrot.lane.b32.xlu0 %v972, 32
    %v989 = vpop.permute.xlu0 %988
    %990 = vrot.lane.b32.xlu0 %v973, 32
    %v991 = vpop.permute.xlu0 %990
    %992 = vrot.lane.b32.xlu0 %v974, 32
    %v993 = vpop.permute.xlu0 %992
    %994 = vrot.lane.b32.xlu0 %v975, 32
    %v995 = vpop.permute.xlu0 %994
    %996 = vrot.lane.b32.xlu0 %v976, 32
    %v997 = vpop.permute.xlu0 %996
    %998 = vrot.lane.b32.xlu0 %v977, 32
    %v999 = vpop.permute.xlu0 %998
    %1000 = vrot.lane.b32.xlu0 %v978, 32
    %v1001 = vpop.permute.xlu0 %1000
    %1002 = vrot.lane.b32.xlu0 %v979, 32
    %v1003 = vpop.permute.xlu0 %1002
    %v1012 = vsel %vm157, %v989, 0.0
    %1013 = vadd.xlane.f32.xlu0 %v1012
    %v1014 = vpop.xlane.xlu0 %1013
    %v1015 = vsel %vm157, %v991, 0.0
    %1016 = vadd.xlane.f32.xlu0 %v1015
    %v1017 = vpop.xlane.xlu0 %1016
    %v1018 = vsel %vm157, %v993, 0.0
    %1019 = vadd.xlane.f32.xlu0 %v1018
    %v1020 = vpop.xlane.xlu0 %1019
    %v1021 = vsel %vm157, %v995, 0.0
    %1022 = vadd.xlane.f32.xlu0 %v1021
    %v1023 = vpop.xlane.xlu0 %1022
    %v1024 = vsel %vm157, %v997, 0.0
    %1025 = vadd.xlane.f32.xlu0 %v1024
    %v1026 = vpop.xlane.xlu0 %1025
    %v1027 = vsel %vm157, %v999, 0.0
    %1028 = vadd.xlane.f32.xlu0 %v1027
    %v1029 = vpop.xlane.xlu0 %1028
    %v1030 = vsel %vm157, %v1001, 0.0
    %1031 = vadd.xlane.f32.xlu0 %v1030
    %v1032 = vpop.xlane.xlu0 %1031
    %v1033 = vsel %vm157, %v1003, 0.0
    %1034 = vadd.xlane.f32.xlu0 %v1033
    %v1035 = vpop.xlane.xlu0 %1034
    %s1037 = vtos %v18
    %v1038 = vstv %s1037
    %v1040 = vadd.f32 %v1014, %v1038
    %v1041 = vadd.f32 %v1017, %v1038
    %v1042 = vadd.f32 %v1020, %v1038
    %v1043 = vadd.f32 %v1023, %v1038
    %v1044 = vadd.f32 %v1026, %v1038
    %v1045 = vadd.f32 %v1029, %v1038
    %v1046 = vadd.f32 %v1032, %v1038
    %v1047 = vadd.f32 %v1035, %v1038
    %v1056 = vlaneseq
    %v1057 = vand.u32 %v1056, 127
    %v1058 = vlaneseq
    %v1059 = vshrl.u32 %v1058, 7
    %v1060 = vsub.s32 %v1057, %v1059
    %v1061 = vrot.slane %v1040, %v1060
    %v1062 = vlaneseq
    %v1063 = vshrl.u32 %v1062, 7
    %v1064 = vsub.s32 %v1057, %v1063
    %v1065 = vrot.slane %v1041, %v1064
    %v1066 = vlaneseq
    %v1067 = vshrl.u32 %v1066, 7
    %v1068 = vsub.s32 %v1057, %v1067
    %v1069 = vrot.slane %v1042, %v1068
    %v1070 = vlaneseq
    %v1071 = vshrl.u32 %v1070, 7
    %v1072 = vsub.s32 %v1057, %v1071
    %v1073 = vrot.slane %v1043, %v1072
    %v1074 = vlaneseq
    %v1075 = vshrl.u32 %v1074, 7
    %v1076 = vsub.s32 %v1057, %v1075
    %v1077 = vrot.slane %v1044, %v1076
    %v1078 = vlaneseq
    %v1079 = vshrl.u32 %v1078, 7
    %v1080 = vsub.s32 %v1057, %v1079
    %v1081 = vrot.slane %v1045, %v1080
    %v1082 = vlaneseq
    %v1083 = vshrl.u32 %v1082, 7
    %v1084 = vsub.s32 %v1057, %v1083
    %v1085 = vrot.slane %v1046, %v1084
    %v1086 = vlaneseq
    %v1087 = vshrl.u32 %v1086, 7
    %v1088 = vsub.s32 %v1057, %v1087
    %v1089 = vrot.slane %v1047, %v1088
    %vm1090 = vcmask 1041409
    %v1091 = vsel %vm1090, %v1065, %v1061
    %vm1092 = vcmask 1042434
    %v1093 = vsel %vm1092, %v1069, %v1091
    %vm1094 = vcmask 1043459
    %v1095 = vsel %vm1094, %v1073, %v1093
    %vm1096 = vcmask 1044484
    %v1097 = vsel %vm1096, %v1077, %v1095
    %vm1098 = vcmask 1045509
    %v1099 = vsel %vm1098, %v1081, %v1097
    %vm1100 = vcmask 1046534
    %v1101 = vsel %vm1100, %v1085, %v1099
    %vm1102 = vcmask 1047559
    %v1103 = vsel %vm1102, %v1089, %v1101
    %1105 = vst.msk [vmem:[#allocation2] sm:$0xff] %vm27, %v1103
    // Predicated region
    $region10: #{tpu_custom_call.1} parent=1 // pred_check
      _
    $region11: #{tpu_custom_call.1} parent=1 // pred_check_branch
      %1107 = sbr.rel (0) target = $region13
    $region12: #{tpu_custom_call.1} parent=1 // pred_region
      %s1109 = ssub.s32 128, 128
      %1110 = vsyncadd [#allocation3], %s1109
      %s1112 = sshll.u32 [#allocation2], 4
      %s1113 = int_to_ptr.vmem [resolvable:$true] %s1112
      %1115 = dma.vmem_to_hbm [thread:$0]  %s1113, 128, %s2, [#allocation3]
    $region13: #{tpu_custom_call.1} parent=1 // pred_fallthru
      _
    // Predicated region
    $region14: #{tpu_custom_call.1} parent=1 // pred_check
      _
    $region15: #{tpu_custom_call.1} parent=1 // pred_check_branch
      %1117 = sbr.rel (0) target = $region17
    $region16: #{tpu_custom_call.1} parent=1 // pred_region
      %1118 = dma.done [#allocation3], 128
    $region17: #{tpu_custom_call.1} parent=1 // pred_fallthru
      _
    %1119 = vsyncpa [#allocation3], 1

</llo_original>
